<compile_context>
chip_gen: v6e
topology: v6e:2x2x1
jax: 0.10.0
libtpu: 0.0.40
codegen_flags: <defaults>
</compile_context>

<pallas_src>
import numpy as np
from typing import NamedTuple

import jax
import jax.numpy as jnp
from jax.experimental import pallas as pl
from jax.experimental.pallas import tpu as pltpu

HIDDEN = 128          # hidden width of the DQN
BATCH_ALIGN = 128     # batch sits on the lane axis -> tiles are multiples of 128
A_PAD_MIN = 16        # n_actions padded (sublane axis) to >=16: safe for f32 and bf16 out


def _round_up(n, m):
    return (n + m - 1) // m * m


def _cdiv(a, b):
    return (a + b - 1) // b


# ----------------------------- kernel ---------------------------------------
def dqn_kernel(xT_ref, w1t_ref, b1_ref, w2t_ref, b2_ref, oT_ref):
    # All operands keep the batch dimension on the dense 128-lane axis.
    x = xT_ref[...].astype(jnp.float32)                                   # (k_pad, tile_b)
    h = jnp.dot(w1t_ref[...], x, preferred_element_type=jnp.float32)      # (128, tile_b)
    h = jnp.maximum(h + b1_ref[...], 0.0)                                 # bias + ReLU (VPU)
    q = jnp.dot(w2t_ref[...], h, preferred_element_type=jnp.float32)      # (a_pad, tile_b)
    oT_ref[...] = (q + b2_ref[...]).astype(oT_ref.dtype)                  # lane-dense store


# ------------------------ one-time parameter prep ----------------------------
class PreparedParams(NamedTuple):
    w1t: jax.Array    # (HIDDEN, k_pad)  f32   == padded layer1.weight
    b1c: jax.Array    # (HIDDEN, 1)      f32
    w2t: jax.Array    # (a_pad, HIDDEN)  f32   == padded layer2.weight
    b2c: jax.Array    # (a_pad, 1)       f32
    w1: jax.Array     # originals, for the small-batch jnp fast path
    b1: jax.Array
    w2: jax.Array
    b2: jax.Array
    n_obs: int
    n_actions: int
    k_pad: int
    a_pad: int
    x_dtype: np.dtype  # dtype x is cast to before the kernel (f32 or bf16)


def prepare_params(w1, b1, w2, b2, *, x_dtype=jnp.float32):
    """Pad / lay out the weights once (hoisted out of the per-forward path).

    w1: (128, n_obs) = layer1.weight, b1: (128,), w2: (n_actions, 128) = layer2.weight,
    b2: (n_actions,).  x_dtype: dtype the kernel reads x in (bf16 halves x HBM traffic).
    """
    hidden, n_obs = w1.shape
    n_actions, hidden2 = w2.shape
    assert hidden == HIDDEN and hidden2 == HIDDEN
    f32 = jnp.float32
    x_dtype = np.dtype(x_dtype)
    k_align = 16 if x_dtype.itemsize < 4 else 8
    k_pad = max(k_align, _round_up(n_obs, k_align))
    a_pad = max(A_PAD_MIN, _round_up(n_actions, 8))

    w1t = jnp.zeros((HIDDEN, k_pad), f32).at[:, :n_obs].set(w1.astype(f32))
    b1c = b1.astype(f32).reshape(HIDDEN, 1)
    w2t = jnp.zeros((a_pad, HIDDEN), f32).at[:n_actions, :].set(w2.astype(f32))
    b2c = jnp.zeros((a_pad, 1), f32).at[:n_actions, 0].set(b2.astype(f32))
    return PreparedParams(w1t, b1c, w2t, b2c, w1, b1, w2, b2,
                          n_obs, n_actions, k_pad, a_pad, x_dtype)


# ------------------------------- forward -------------------------------------
def dqn_forward(x, params, *, tile_b_max=2048, out_dtype=jnp.float32,
                fast_path_max_b=64, trim=True):
    """relu(x @ W1^T + b1) @ W2^T + b2 with a fused Pallas kernel for large batches.

    x: (B, n_obs).  Returns (B, n_actions) in `out_dtype` (or the raw padded
    (a_pad, b_pad) kernel output when trim=False, letting the consumer fuse the slice).
    """
    B, n_obs = x.shape
    assert n_obs == params.n_obs

    # Act-time / tiny batches: padding + kernel launch would dominate; let XLA fuse it.
    if B <= fast_path_max_b:
        q = jnp.maximum(x @ params.w1.T + params.b1, 0.0) @ params.w2.T + params.b2
        return q.astype(out_dtype)

    k_pad, a_pad = params.k_pad, params.a_pad
    x_dtype = params.x_dtype
    x_size = np.dtype(x_dtype).itemsize
    out_size = np.dtype(out_dtype).itemsize

    # Balanced batch tiling on the lane axis (multiples of 128):
    #   * >= 2 grid steps whenever there is enough work (keeps v7x's 2nd TC busy),
    #   * minimal padding when B > tile_b_max.
    n_tiles = max(1, _cdiv(B, tile_b_max))
    if n_tiles == 1 and B > BATCH_ALIGN:
        n_tiles = 2
    tile_b = _round_up(_cdiv(B, n_tiles), BATCH_ALIGN)
    b_pad = _round_up(B, tile_b)
    grid = (b_pad // tile_b,)

    # Per-call padding of x only (weights were pre-padded in prepare_params).
    xT = jnp.zeros((k_pad, b_pad), x_dtype).at[:n_obs, :B].set(x.T.astype(x_dtype))

    w_bytes = sum(int(a.size) * a.dtype.itemsize
                  for a in (params.w1t, params.b1c, params.w2t, params.b2c))
    vmem_need = (2 * (k_pad * tile_b * x_size + a_pad * tile_b * out_size)  # dbl-buffered x/out
                 + 2 * w_bytes                                              # resident weights
                 + HIDDEN * tile_b * 4)                                     # (128, tile_b) hidden value
    vmem_limit = int(min(48 * 1024 * 1024, max(32 * 1024 * 1024, 2 * vmem_need)))

    cost = pl.CostEstimate(
        flops=2 * b_pad * (k_pad * HIDDEN + HIDDEN * a_pad),
        transcendentals=0,
        bytes_accessed=int(k_pad * b_pad * x_size + w_bytes + a_pad * b_pad * out_size),
    )

    out = pl.pallas_call(
        dqn_kernel,
        out_shape=jax.ShapeDtypeStruct((a_pad, b_pad), out_dtype),
        grid=grid,
        in_specs=[
            pl.BlockSpec((k_pad, tile_b), lambda i: (0, i)),     # x^T: batch on dense lanes
            pl.BlockSpec((HIDDEN, k_pad), lambda i: (0, 0)),     # W1 (resident in VMEM)
            pl.BlockSpec((HIDDEN, 1), lambda i: (0, 0)),         # b1 (resident)
            pl.BlockSpec((a_pad, HIDDEN), lambda i: (0, 0)),     # W2 (resident)
            pl.BlockSpec((a_pad, 1), lambda i: (0, 0)),          # b2 (resident)
        ],
        out_specs=pl.BlockSpec((a_pad, tile_b), lambda i: (0, i)),
        compiler_params=pltpu.CompilerParams(
            dimension_semantics=("parallel",),      # shard batch tiles across TCs on v7x
            vmem_limit_bytes=vmem_limit,
        ),
        cost_estimate=cost,
    )(xT, params.w1t, params.b1c, params.w2t, params.b2c)

    if trim:
        return out[:params.n_actions, :B].T        # (B, n_actions)
    return out                                     # (a_pad, b_pad): consumer fuses the slice


# ------------------------------ init / demo ----------------------------------
def init_params(key, n_observations, n_actions, hidden=HIDDEN):
    # PyTorch nn.Linear-style layout and uniform(-1/sqrt(fan_in), 1/sqrt(fan_in)) init.
    k1, k2, k3, k4 = jax.random.split(key, 4)
    bound1 = 1.0 / np.sqrt(n_observations)
    bound2 = 1.0 / np.sqrt(hidden)
    w1 = jax.random.uniform(k1, (hidden, n_observations), jnp.float32, -bound1, bound1)
    b1 = jax.random.uniform(k2, (hidden,), jnp.float32, -bound1, bound1)
    w2 = jax.random.uniform(k3, (n_actions, hidden), jnp.float32, -bound2, bound2)
    b2 = jax.random.uniform(k4, (n_actions,), jnp.float32, -bound2, bound2)
    return w1, b1, w2, b2


if __name__ == "__main__":
    key = jax.random.PRNGKey(0)
    n_observations, n_actions, batch = 4, 2, 2   # CartPole-like sizes

    kx, kp = jax.random.split(key)
    x = jax.random.normal(kx, (batch, n_observations), jnp.float32)
    w1, b1, w2, b2 = init_params(kp, n_observations, n_actions)

    def ref_fn(xx):
        return jnp.maximum(xx @ w1.T + b1, 0.0) @ w2.T + b2

    params_f32 = prepare_params(w1, b1, w2, b2)

    # 1) Small CartPole-sized batch, forcing the Pallas path.
    q = jax.block_until_ready(dqn_forward(x, params_f32, fast_path_max_b=0))
    assert q.shape == (batch, n_actions)
    assert jnp.allclose(q, ref_fn(x), atol=1e-5, rtol=1e-5)

    # 2) Larger, non-tile-aligned replay-buffer batch (2 grid steps), jitted.
    xb = jax.random.normal(jax.random.PRNGKey(1), (3000, n_observations), jnp.float32)
    fwd = jax.jit(lambda xx: dqn_forward(xx, params_f32))
    qb = jax.block_until_ready(fwd(xb))
    assert qb.shape == (3000, n_actions)
    assert jnp.allclose(qb, ref_fn(xb), atol=1e-4, rtol=1e-4)

    # 3) bf16 x + bf16 output (halves the kernel's HBM traffic); matmuls stay f32.
    params_bf16 = prepare_params(w1, b1, w2, b2, x_dtype=jnp.bfloat16)
    qbf = jax.block_until_ready(dqn_forward(xb, params_bf16, out_dtype=jnp.bfloat16))
    assert qbf.shape == (3000, n_actions)
    assert jnp.allclose(qbf.astype(jnp.float32), ref_fn(xb), atol=5e-2, rtol=5e-2)

    # 4) Act-time fast path (B=1) skips the kernel entirely.
    q1 = jax.block_until_ready(dqn_forward(x[:1], params_f32))
    assert q1.shape == (1, n_actions)
    assert jnp.allclose(q1, ref_fn(x[:1]), atol=1e-5, rtol=1e-5)

    print("KERNEL_OK")
</pallas_src>

<mosaic_0001>
module attributes {stable_mosaic.version = 11 : i64} {
  func.func @dqn_kernel(%arg0: i32, %arg1: memref<8x128xf32, #tpu.memory_space<vmem>>, %arg2: memref<128x8xf32, #tpu.memory_space<vmem>>, %arg3: memref<128x1xf32, #tpu.memory_space<vmem>>, %arg4: memref<16x128xf32, #tpu.memory_space<vmem>>, %arg5: memref<16x1xf32, #tpu.memory_space<vmem>>, %arg6: memref<16x128xf32, #tpu.memory_space<vmem>>) attributes {dimension_semantics = [#tpu.dimension_semantics<parallel>], iteration_bounds = array<i64: 1>, scalar_prefetch = 0 : i64, scratch_operands = 0 : i64, tpu.core_type = #tpu.core_type<tc>, window_params = [{transform_indices = @transform_0, window_bounds = array<i64: 8, 128>}, {pipeline_mode = #tpu.pipeline_mode<synchronous>, transform_indices = @transform_1, window_bounds = array<i64: 128, 8>}, {pipeline_mode = #tpu.pipeline_mode<synchronous>, transform_indices = @transform_2, window_bounds = array<i64: 128, 1>}, {pipeline_mode = #tpu.pipeline_mode<synchronous>, transform_indices = @transform_3, window_bounds = array<i64: 16, 128>}, {pipeline_mode = #tpu.pipeline_mode<synchronous>, transform_indices = @transform_4, window_bounds = array<i64: 16, 1>}, {transform_indices = @transform_5, window_bounds = array<i64: 16, 128>}]} {
    %c0 = arith.constant 0 : index
    %c0_0 = arith.constant 0 : index
    %0 = vector.load %arg1[%c0, %c0_0] : memref<8x128xf32, #tpu.memory_space<vmem>>, vector<8x128xf32>
    %c0_1 = arith.constant 0 : index
    %c0_2 = arith.constant 0 : index
    %1 = vector.load %arg2[%c0_1, %c0_2] : memref<128x8xf32, #tpu.memory_space<vmem>>, vector<128x8xf32>
    %cst = arith.constant dense<0.000000e+00> : vector<128x128xf32>
    %2 = tpu.matmul %1, %0, %cst {dimension_numbers = #tpu.dot_dimension_numbers<[1], [0], [0], [1], [0, 0, 1, 1], [], []>} : vector<128x8xf32>, vector<8x128xf32>, vector<128x128xf32> -> vector<128x128xf32>
    %c0_3 = arith.constant 0 : index
    %c0_4 = arith.constant 0 : index
    %3 = vector.load %arg3[%c0_3, %c0_4] : memref<128x1xf32, #tpu.memory_space<vmem>>, vector<128x1xf32>
    %4 = vector.broadcast %3 : vector<128x1xf32> to vector<128x128xf32>
    %5 = arith.addf %2, %4 : vector<128x128xf32>
    %cst_5 = arith.constant 0.000000e+00 : f32
    %6 = vector.broadcast %cst_5 : f32 to vector<128x128xf32>
    %7 = arith.maximumf %5, %6 : vector<128x128xf32>
    %c0_6 = arith.constant 0 : index
    %c0_7 = arith.constant 0 : index
    %8 = vector.load %arg4[%c0_6, %c0_7] : memref<16x128xf32, #tpu.memory_space<vmem>>, vector<16x128xf32>
    %cst_8 = arith.constant dense<0.000000e+00> : vector<16x128xf32>
    %9 = tpu.matmul %8, %7, %cst_8 {dimension_numbers = #tpu.dot_dimension_numbers<[1], [0], [0], [1], [0, 0, 1, 1], [], []>} : vector<16x128xf32>, vector<128x128xf32>, vector<16x128xf32> -> vector<16x128xf32>
    %c0_9 = arith.constant 0 : index
    %c0_10 = arith.constant 0 : index
    %10 = vector.load %arg5[%c0_9, %c0_10] : memref<16x1xf32, #tpu.memory_space<vmem>>, vector<16x1xf32>
    %11 = vector.broadcast %10 : vector<16x1xf32> to vector<16x128xf32>
    %12 = arith.addf %9, %11 : vector<16x128xf32>
    %c0_11 = arith.constant 0 : index
    %c0_12 = arith.constant 0 : index
    %13 = vector.load %arg6[%c0_11, %c0_12] : memref<16x128xf32, #tpu.memory_space<vmem>>, vector<16x128xf32>
    tpu.vector_store %arg6[%c0_11, %c0_12], %12 {strides = array<i32>} : memref<16x128xf32, #tpu.memory_space<vmem>>, vector<16x128xf32>,
    return
  }
  func.func @transform_0(%arg0: i32) -> (i32, i32) {
    %c0_i32 = arith.constant 0 : i32
    %c0_i32_0 = arith.constant 0 : i32
    return %c0_i32, %arg0 : i32, i32
  }
  func.func @transform_1(%arg0: i32) -> (i32, i32) {
    %c0_i32 = arith.constant 0 : i32
    %c0_i32_0 = arith.constant 0 : i32
    %c0_i32_1 = arith.constant 0 : i32
    return %c0_i32, %c0_i32_0 : i32, i32
  }
  func.func @transform_2(%arg0: i32) -> (i32, i32) {
    %c0_i32 = arith.constant 0 : i32
    %c0_i32_0 = arith.constant 0 : i32
    %c0_i32_1 = arith.constant 0 : i32
    return %c0_i32, %c0_i32_0 : i32, i32
  }
  func.func @transform_3(%arg0: i32) -> (i32, i32) {
    %c0_i32 = arith.constant 0 : i32
    %c0_i32_0 = arith.constant 0 : i32
    %c0_i32_1 = arith.constant 0 : i32
    return %c0_i32, %c0_i32_0 : i32, i32
  }
  func.func @transform_4(%arg0: i32) -> (i32, i32) {
    %c0_i32 = arith.constant 0 : i32
    %c0_i32_0 = arith.constant 0 : i32
    %c0_i32_1 = arith.constant 0 : i32
    return %c0_i32, %c0_i32_0 : i32, i32
  }
  func.func @transform_5(%arg0: i32) -> (i32, i32) {
    %c0_i32 = arith.constant 0 : i32
    %c0_i32_0 = arith.constant 0 : i32
    return %c0_i32, %arg0 : i32, i32
  }
}

</mosaic_0001>

<llo_original>
// kernel: tpu_custom_call.1
$region0: #{tpu_custom_call.1}
  #allocation0 [shape = 'u32[]', space=smem, size = 0x4, offset = 0x4, fixed_abs, tag = 'smem constant byte address 0x4 - core index']
  #allocation1 [shape = 'u32[144,128]{1,0:T(1,128)}', space=vmem, size = 0x12000, scoped, tag = 'internal scratch']
  %s0 = inlined_call_operand.vmem [shape: f32[8,128], index: 0, kind: input, shape index: {}]
  %s1 = inlined_call_operand.vmem [shape: f32[128,8], index: 1, kind: input, shape index: {}]
  %s2 = inlined_call_operand.vmem [shape: f32[128,1], index: 2, kind: input, shape index: {}]
  %s3 = inlined_call_operand.vmem [shape: f32[16,128], index: 3, kind: input, shape index: {}]
  %s4 = inlined_call_operand.vmem [shape: f32[16,1], index: 4, kind: input, shape index: {}]
  %s5 = inlined_call_operand.hbm [shape: f32[16,128], index: 5, kind: output, shape index: {}]
  %s6 = sld [smem:[#allocation0]]
  $region30: #{tpu_custom_call.1} parent=0
    _
  %s8 = ssub.s32 1, %s6
  %s9 = scalar_select 0, %s8, %s6
  $region1: #{tpu_custom_call.1} parent=0
    #allocation2 [shape = 'u8[8192]{0}', space=vmem, size = 0x2000, scoped, tag = 'output window, operand 0, single buffered']
    #allocation3 [shape = 's32[1]{0}', space=sflag, size = 0x4, scoped, tag = 'scoped memory for tpu_custom_call.1']
    %10 = vsyncpa [#allocation3], 0
    // Predicated region
    $region2: #{tpu_custom_call.1} parent=1 // pred_check
      _
    $region3: #{tpu_custom_call.1} parent=1 // pred_check_branch
      %12 = sbr.rel (0) target = $region5
    $region4: #{tpu_custom_call.1} parent=1 // pred_region
      _
    $region5: #{tpu_custom_call.1} parent=1 // pred_fallthru
      _
    // Predicated region
    $region6: #{tpu_custom_call.1} parent=1 // pred_check
      _
    $region7: #{tpu_custom_call.1} parent=1 // pred_check_branch
      %14 = sbr.rel (0) target = $region9
    $region8: #{tpu_custom_call.1} parent=1 // pred_region
      _
    $region9: #{tpu_custom_call.1} parent=1 // pred_fallthru
      _
    // Predicated region
    $region10: #{tpu_custom_call.1} parent=1 // pred_check
      _
    $region11: #{tpu_custom_call.1} parent=1 // pred_check_branch
      %16 = sbr.rel (0) target = $region13
    $region12: #{tpu_custom_call.1} parent=1 // pred_region
      _
    $region13: #{tpu_custom_call.1} parent=1 // pred_fallthru
      _
    // Predicated region
    $region14: #{tpu_custom_call.1} parent=1 // pred_check
      _
    $region15: #{tpu_custom_call.1} parent=1 // pred_check_branch
      %18 = sbr.rel (0) target = $region17
    $region16: #{tpu_custom_call.1} parent=1 // pred_region
      _
    $region17: #{tpu_custom_call.1} parent=1 // pred_fallthru
      _
    // Predicated region
    $region18: #{tpu_custom_call.1} parent=1 // pred_check
      _
    $region19: #{tpu_custom_call.1} parent=1 // pred_check_branch
      %20 = sbr.rel (0) target = $region21
    $region20: #{tpu_custom_call.1} parent=1 // pred_region
      _
    $region21: #{tpu_custom_call.1} parent=1 // pred_fallthru
      _
    %v21 = vld [vmem:[%s0] sm:$0xff]
    %v22 = vld [vmem:[%s1] sm:$0xff]
    %v23 = vld [vmem:[%s1 + $0x8] sm:$0xff]
    %v24 = vld [vmem:[%s1 + $0x10] sm:$0xff]
    %v25 = vld [vmem:[%s1 + $0x18] sm:$0xff]
    %v26 = vld [vmem:[%s1 + $0x20] sm:$0xff]
    %v27 = vld [vmem:[%s1 + $0x28] sm:$0xff]
    %v28 = vld [vmem:[%s1 + $0x30] sm:$0xff]
    %v29 = vld [vmem:[%s1 + $0x38] sm:$0xff]
    %v30 = vld [vmem:[%s1 + $0x40] sm:$0xff]
    %v31 = vld [vmem:[%s1 + $0x48] sm:$0xff]
    %v32 = vld [vmem:[%s1 + $0x50] sm:$0xff]
    %v33 = vld [vmem:[%s1 + $0x58] sm:$0xff]
    %v34 = vld [vmem:[%s1 + $0x60] sm:$0xff]
    %v35 = vld [vmem:[%s1 + $0x68] sm:$0xff]
    %v36 = vld [vmem:[%s1 + $0x70] sm:$0xff]
    %v37 = vld [vmem:[%s1 + $0x78] sm:$0xff]
    %v38 = vld [vmem:[%s2] sm:$0xff]
    %v39 = vld [vmem:[%s2 + $0x8] sm:$0xff]
    %v40 = vld [vmem:[%s2 + $0x10] sm:$0xff]
    %v41 = vld [vmem:[%s2 + $0x18] sm:$0xff]
    %v42 = vld [vmem:[%s2 + $0x20] sm:$0xff]
    %v43 = vld [vmem:[%s2 + $0x28] sm:$0xff]
    %v44 = vld [vmem:[%s2 + $0x30] sm:$0xff]
    %v45 = vld [vmem:[%s2 + $0x38] sm:$0xff]
    %v46 = vld [vmem:[%s2 + $0x40] sm:$0xff]
    %v47 = vld [vmem:[%s2 + $0x48] sm:$0xff]
    %v48 = vld [vmem:[%s2 + $0x50] sm:$0xff]
    %v49 = vld [vmem:[%s2 + $0x58] sm:$0xff]
    %v50 = vld [vmem:[%s2 + $0x60] sm:$0xff]
    %v51 = vld [vmem:[%s2 + $0x68] sm:$0xff]
    %v52 = vld [vmem:[%s2 + $0x70] sm:$0xff]
    %v53 = vld [vmem:[%s2 + $0x78] sm:$0xff]
    %55 = vset.pattern.permute.xlu0 0
    %56 = vperm.xlu0 %55, %v38
    %v57 = vpop.permute.xlu0 %56
    %60 = vset.pattern.permute.xlu0 0
    %61 = vperm.xlu0 %60, %v39
    %v62 = vpop.permute.xlu0 %61
    %65 = vset.pattern.permute.xlu0 0
    %66 = vperm.xlu0 %65, %v40
    %v67 = vpop.permute.xlu0 %66
    %70 = vset.pattern.permute.xlu0 0
    %71 = vperm.xlu0 %70, %v41
    %v72 = vpop.permute.xlu0 %71
    %75 = vset.pattern.permute.xlu0 0
    %76 = vperm.xlu0 %75, %v42
    %v77 = vpop.permute.xlu0 %76
    %80 = vset.pattern.permute.xlu0 0
    %81 = vperm.xlu0 %80, %v43
    %v82 = vpop.permute.xlu0 %81
    %85 = vset.pattern.permute.xlu0 0
    %86 = vperm.xlu0 %85, %v44
    %v87 = vpop.permute.xlu0 %86
    %90 = vset.pattern.permute.xlu0 0
    %91 = vperm.xlu0 %90, %v45
    %v92 = vpop.permute.xlu0 %91
    %95 = vset.pattern.permute.xlu0 0
    %96 = vperm.xlu0 %95, %v46
    %v97 = vpop.permute.xlu0 %96
    %100 = vset.pattern.permute.xlu0 0
    %101 = vperm.xlu0 %100, %v47
    %v102 = vpop.permute.xlu0 %101
    %105 = vset.pattern.permute.xlu0 0
    %106 = vperm.xlu0 %105, %v48
    %v107 = vpop.permute.xlu0 %106
    %110 = vset.pattern.permute.xlu0 0
    %111 = vperm.xlu0 %110, %v49
    %v112 = vpop.permute.xlu0 %111
    %115 = vset.pattern.permute.xlu0 0
    %116 = vperm.xlu0 %115, %v50
    %v117 = vpop.permute.xlu0 %116
    %120 = vset.pattern.permute.xlu0 0
    %121 = vperm.xlu0 %120, %v51
    %v122 = vpop.permute.xlu0 %121
    %125 = vset.pattern.permute.xlu0 0
    %126 = vperm.xlu0 %125, %v52
    %v127 = vpop.permute.xlu0 %126
    %130 = vset.pattern.permute.xlu0 0
    %131 = vperm.xlu0 %130, %v53
    %v132 = vpop.permute.xlu0 %131
    %vm134 = vcmask 64512
    %v136 = vsel %vm134, %v22, 0
    %v139 = vsel %vm134, %v23, 0
    %v142 = vsel %vm134, %v24, 0
    %v145 = vsel %vm134, %v25, 0
    %v148 = vsel %vm134, %v26, 0
    %v151 = vsel %vm134, %v27, 0
    %v154 = vsel %vm134, %v28, 0
    %v157 = vsel %vm134, %v29, 0
    %v160 = vsel %vm134, %v30, 0
    %v163 = vsel %vm134, %v31, 0
    %v166 = vsel %vm134, %v32, 0
    %v169 = vsel %vm134, %v33, 0
    %v172 = vsel %vm134, %v34, 0
    %v175 = vsel %vm134, %v35, 0
    %v178 = vsel %vm134, %v36, 0
    %v181 = vsel %vm134, %v37, 0
    %183 = vmatprep.subr.mxu0 0.0
    %184 = vmatpush1.msra.mxu0 0.0
    %185 = vmatprep.subr.mxu0 0.0
    %186 = vmatpush1.msra.mxu0 0.0
    %187 = vmatprep.subr.mxu0 0.0
    %188 = vmatpush1.msra.mxu0 0.0
    %189 = vmatprep.subr.mxu0 0.0
    %190 = vmatpush1.msra.mxu0 0.0
    %191 = vmatprep.subr.mxu0 0.0
    %192 = vmatpush1.msra.mxu0 0.0
    %193 = vmatprep.subr.mxu0 0.0
    %194 = vmatpush1.msra.mxu0 0.0
    %195 = vmatprep.subr.mxu0 0.0
    %196 = vmatpush1.msra.mxu0 0.0
    %197 = vmatprep.subr.mxu0 0.0
    %198 = vmatpush1.msra.mxu0 0.0
    %199 = vmatprep.subr.mxu0 0.0
    %200 = vmatpush1.msra.mxu0 0.0
    %201 = vmatprep.subr.mxu0 0.0
    %202 = vmatpush1.msra.mxu0 0.0
    %203 = vmatprep.subr.mxu0 0.0
    %204 = vmatpush1.msra.mxu0 0.0
    %205 = vmatprep.subr.mxu0 0.0
    %206 = vmatpush1.msra.mxu0 0.0
    %207 = vmatprep.subr.mxu0 0.0
    %208 = vmatpush1.msra.mxu0 0.0
    %209 = vmatprep.subr.mxu0 0.0
    %210 = vmatpush1.msra.mxu0 0.0
    %211 = vmatprep.subr.mxu0 0.0
    %212 = vmatpush1.msra.mxu0 0.0
    %213 = vmatprep.subr.mxu0 0.0
    %214 = vmatpush1.msra.mxu0 %v21
    %215 = vmatprep.subr.mxu0 0.0
    %216 = vmatpush2.msra.mxu0 0.0
    %217 = vmatprep.subr.mxu0 0.0
    %218 = vmatpush2.msra.mxu0 0.0
    %219 = vmatprep.subr.mxu0 0.0
    %220 = vmatpush2.msra.mxu0 0.0
    %221 = vmatprep.subr.mxu0 0.0
    %222 = vmatpush2.msra.mxu0 0.0
    %223 = vmatprep.subr.mxu0 0.0
    %224 = vmatpush2.msra.mxu0 0.0
    %225 = vmatprep.subr.mxu0 0.0
    %226 = vmatpush2.msra.mxu0 0.0
    %227 = vmatprep.subr.mxu0 0.0
    %228 = vmatpush2.msra.mxu0 0.0
    %229 = vmatprep.subr.mxu0 0.0
    %230 = vmatpush2.msra.mxu0 0.0
    %231 = vmatprep.subr.mxu0 0.0
    %232 = vmatpush2.msra.mxu0 0.0
    %233 = vmatprep.subr.mxu0 0.0
    %234 = vmatpush2.msra.mxu0 0.0
    %235 = vmatprep.subr.mxu0 0.0
    %236 = vmatpush2.msra.mxu0 0.0
    %237 = vmatprep.subr.mxu0 0.0
    %238 = vmatpush2.msra.mxu0 0.0
    %239 = vmatprep.subr.mxu0 0.0
    %240 = vmatpush2.msra.mxu0 0.0
    %241 = vmatprep.subr.mxu0 0.0
    %242 = vmatpush2.msra.mxu0 0.0
    %243 = vmatprep.subr.mxu0 0.0
    %244 = vmatpush2.msra.mxu0 0.0
    %245 = vmatprep.subr.mxu0 0.0
    %246 = vmatpush2.msra.mxu0 0.0
    %247 = vmatprep.mubr.f32.mxu0 0.0
    %248 = vmatmul.mubr.f32.gmra.mxu0 %v136
    %v249 = vpop.f32.mrf.mxu0
    %v250 = vadd.f32 %v57, %v249
    %v251 = vpop.f32.mrf.mxu0
    %252 = vmatprep.mubr.f32.mxu0 0.0
    %253 = vmatmul.mubr.f32.gmra.mxu0 %v139
    %v254 = vpop.f32.mrf.mxu0
    %v255 = vadd.f32 %v62, %v254
    %v256 = vpop.f32.mrf.mxu0
    %257 = vmatprep.mubr.f32.mxu0 0.0
    %258 = vmatmul.mubr.f32.gmra.mxu0 %v142
    %v259 = vpop.f32.mrf.mxu0
    %v260 = vadd.f32 %v67, %v259
    %v261 = vpop.f32.mrf.mxu0
    %262 = vmatprep.mubr.f32.mxu0 0.0
    %263 = vmatmul.mubr.f32.gmra.mxu0 %v145
    %v264 = vpop.f32.mrf.mxu0
    %v265 = vadd.f32 %v72, %v264
    %v266 = vpop.f32.mrf.mxu0
    %267 = vmatprep.mubr.f32.mxu0 0.0
    %268 = vmatmul.mubr.f32.gmra.mxu0 %v148
    %v269 = vpop.f32.mrf.mxu0
    %v270 = vadd.f32 %v77, %v269
    %v271 = vpop.f32.mrf.mxu0
    %272 = vmatprep.mubr.f32.mxu0 0.0
    %273 = vmatmul.mubr.f32.gmra.mxu0 %v151
    %v274 = vpop.f32.mrf.mxu0
    %v275 = vadd.f32 %v82, %v274
    %v276 = vpop.f32.mrf.mxu0
    %277 = vmatprep.mubr.f32.mxu0 0.0
    %278 = vmatmul.mubr.f32.gmra.mxu0 %v154
    %v279 = vpop.f32.mrf.mxu0
    %v280 = vadd.f32 %v87, %v279
    %v281 = vpop.f32.mrf.mxu0
    %282 = vmatprep.mubr.f32.mxu0 0.0
    %283 = vmatmul.mubr.f32.gmra.mxu0 %v157
    %v284 = vpop.f32.mrf.mxu0
    %v285 = vadd.f32 %v92, %v284
    %v286 = vpop.f32.mrf.mxu0
    %287 = vmatprep.mubr.f32.mxu0 0.0
    %288 = vmatmul.mubr.f32.gmra.mxu0 %v160
    %v289 = vpop.f32.mrf.mxu0
    %v290 = vadd.f32 %v97, %v289
    %v291 = vpop.f32.mrf.mxu0
    %292 = vmatprep.mubr.f32.mxu0 0.0
    %293 = vmatmul.mubr.f32.gmra.mxu0 %v163
    %v294 = vpop.f32.mrf.mxu0
    %v295 = vadd.f32 %v102, %v294
    %v296 = vpop.f32.mrf.mxu0
    %297 = vmatprep.mubr.f32.mxu0 0.0
    %298 = vmatmul.mubr.f32.gmra.mxu0 %v166
    %v299 = vpop.f32.mrf.mxu0
    %v300 = vadd.f32 %v107, %v299
    %v301 = vpop.f32.mrf.mxu0
    %302 = vmatprep.mubr.f32.mxu0 0.0
    %303 = vmatmul.mubr.f32.gmra.mxu0 %v169
    %v304 = vpop.f32.mrf.mxu0
    %v305 = vadd.f32 %v112, %v304
    %v306 = vpop.f32.mrf.mxu0
    %307 = vmatprep.mubr.f32.mxu0 0.0
    %308 = vmatmul.mubr.f32.gmra.mxu0 %v172
    %v309 = vpop.f32.mrf.mxu0
    %v310 = vadd.f32 %v117, %v309
    %v311 = vpop.f32.mrf.mxu0
    %312 = vmatprep.mubr.f32.mxu0 0.0
    %313 = vmatmul.mubr.f32.gmra.mxu0 %v175
    %v314 = vpop.f32.mrf.mxu0
    %v315 = vadd.f32 %v122, %v314
    %v316 = vpop.f32.mrf.mxu0
    %317 = vmatprep.mubr.f32.mxu0 0.0
    %318 = vmatmul.mubr.f32.gmra.mxu0 %v178
    %v319 = vpop.f32.mrf.mxu0
    %v320 = vadd.f32 %v127, %v319
    %v321 = vpop.f32.mrf.mxu0
    %322 = vmatprep.mubr.f32.mxu0 0.0
    %323 = vmatmul.mubr.f32.gmra.mxu0 %v181
    %v324 = vpop.f32.mrf.mxu0
    %v325 = vadd.f32 %v132, %v324
    %v326 = vpop.f32.mrf.mxu0
    %327 = vdwg.mxu0
    %v328 = vmax.f32 %v250, 0.0
    %v329 = vmax.f32 %v255, 0.0
    %v330 = vmax.f32 %v260, 0.0
    %v331 = vmax.f32 %v265, 0.0
    %v332 = vmax.f32 %v270, 0.0
    %v333 = vmax.f32 %v275, 0.0
    %v334 = vmax.f32 %v280, 0.0
    %v335 = vmax.f32 %v285, 0.0
    %v336 = vmax.f32 %v290, 0.0
    %v337 = vmax.f32 %v295, 0.0
    %v338 = vmax.f32 %v300, 0.0
    %v339 = vmax.f32 %v305, 0.0
    %v340 = vmax.f32 %v310, 0.0
    %v341 = vmax.f32 %v315, 0.0
    %v342 = vmax.f32 %v320, 0.0
    %v343 = vmax.f32 %v325, 0.0
    %v344 = vld [vmem:[%s3] sm:$0xff]
    %v345 = vld [vmem:[%s3 + $0x8] sm:$0xff]
    %v346 = vld [vmem:[%s4] sm:$0xff]
    %v347 = vld [vmem:[%s4 + $0x8] sm:$0xff]
    %349 = vset.pattern.permute.xlu0 0
    %350 = vperm.xlu0 %349, %v346
    %v351 = vpop.permute.xlu0 %350
    %354 = vset.pattern.permute.xlu0 0
    %355 = vperm.xlu0 %354, %v347
    %v356 = vpop.permute.xlu0 %355
    %358 = vmatprep.subr.mxu0 0.0
    %359 = vmatpush1.msra.mxu0 %v343
    %360 = vmatprep.subr.mxu0 0.0
    %361 = vmatpush1.msra.mxu0 %v342
    %362 = vmatprep.subr.mxu0 0.0
    %363 = vmatpush1.msra.mxu0 %v341
    %364 = vmatprep.subr.mxu0 0.0
    %365 = vmatpush1.msra.mxu0 %v340
    %366 = vmatprep.subr.mxu0 0.0
    %367 = vmatpush1.msra.mxu0 %v339
    %368 = vmatprep.subr.mxu0 0.0
    %369 = vmatpush1.msra.mxu0 %v338
    %370 = vmatprep.subr.mxu0 0.0
    %371 = vmatpush1.msra.mxu0 %v337
    %372 = vmatprep.subr.mxu0 0.0
    %373 = vmatpush1.msra.mxu0 %v336
    %374 = vmatprep.subr.mxu0 0.0
    %375 = vmatpush1.msra.mxu0 %v335
    %376 = vmatprep.subr.mxu0 0.0
    %377 = vmatpush1.msra.mxu0 %v334
    %378 = vmatprep.subr.mxu0 0.0
    %379 = vmatpush1.msra.mxu0 %v333
    %380 = vmatprep.subr.mxu0 0.0
    %381 = vmatpush1.msra.mxu0 %v332
    %382 = vmatprep.subr.mxu0 0.0
    %383 = vmatpush1.msra.mxu0 %v331
    %384 = vmatprep.subr.mxu0 0.0
    %385 = vmatpush1.msra.mxu0 %v330
    %386 = vmatprep.subr.mxu0 0.0
    %387 = vmatpush1.msra.mxu0 %v329
    %388 = vmatprep.subr.mxu0 0.0
    %389 = vmatpush1.msra.mxu0 %v328
    %390 = vmatprep.subr.mxu0 0.0
    %391 = vmatpush2.msra.mxu0 0.0
    %392 = vmatprep.subr.mxu0 0.0
    %393 = vmatpush2.msra.mxu0 0.0
    %394 = vmatprep.subr.mxu0 0.0
    %395 = vmatpush2.msra.mxu0 0.0
    %396 = vmatprep.subr.mxu0 0.0
    %397 = vmatpush2.msra.mxu0 0.0
    %398 = vmatprep.subr.mxu0 0.0
    %399 = vmatpush2.msra.mxu0 0.0
    %400 = vmatprep.subr.mxu0 0.0
    %401 = vmatpush2.msra.mxu0 0.0
    %402 = vmatprep.subr.mxu0 0.0
    %403 = vmatpush2.msra.mxu0 0.0
    %404 = vmatprep.subr.mxu0 0.0
    %405 = vmatpush2.msra.mxu0 0.0
    %406 = vmatprep.subr.mxu0 0.0
    %407 = vmatpush2.msra.mxu0 0.0
    %408 = vmatprep.subr.mxu0 0.0
    %409 = vmatpush2.msra.mxu0 0.0
    %410 = vmatprep.subr.mxu0 0.0
    %411 = vmatpush2.msra.mxu0 0.0
    %412 = vmatprep.subr.mxu0 0.0
    %413 = vmatpush2.msra.mxu0 0.0
    %414 = vmatprep.subr.mxu0 0.0
    %415 = vmatpush2.msra.mxu0 0.0
    %416 = vmatprep.subr.mxu0 0.0
    %417 = vmatpush2.msra.mxu0 0.0
    %418 = vmatprep.subr.mxu0 0.0
    %419 = vmatpush2.msra.mxu0 0.0
    %420 = vmatprep.subr.mxu0 0.0
    %421 = vmatpush2.msra.mxu0 0.0
    %422 = vmatprep.mubr.f32.mxu0 0.0
    %423 = vmatmul.mubr.f32.gmra.mxu0 %v344
    %v424 = vpop.f32.mrf.mxu0
    %v425 = vadd.f32 %v351, %v424
    %v426 = vpop.f32.mrf.mxu0
    %427 = vmatprep.mubr.f32.mxu0 0.0
    %428 = vmatmul.mubr.f32.gmra.mxu0 %v345
    %v429 = vpop.f32.mrf.mxu0
    %v430 = vadd.f32 %v356, %v429
    %v431 = vpop.f32.mrf.mxu0
    %432 = vdwg.mxu0
    %433 = vst [vmem:[#allocation2] sm:$0xff] %v425
    %434 = vst [vmem:[#allocation2 + $0x8] sm:$0xff] %v430
    // Predicated region
    $region22: #{tpu_custom_call.1} parent=1 // pred_check
      _
    $region23: #{tpu_custom_call.1} parent=1 // pred_check_branch
      %436 = sbr.rel (0) target = $region25
    $region24: #{tpu_custom_call.1} parent=1 // pred_region
      %s438 = ssub.s32 256, 256
      %439 = vsyncadd [#allocation3], %s438
      %s440 = sshll.u32 [#allocation2], 4
      %s441 = int_to_ptr.vmem [resolvable:$true] %s440
      %446 = dma.vmem_to_hbm [thread:$0]  %s441, 256, %s5, [#allocation3], 128, 128, 8
    $region25: #{tpu_custom_call.1} parent=1 // pred_fallthru
      _
    // Predicated region
    $region26: #{tpu_custom_call.1} parent=1 // pred_check
      _
    $region27: #{tpu_custom_call.1} parent=1 // pred_check_branch
      %448 = sbr.rel (0) target = $region29
    $region28: #{tpu_custom_call.1} parent=1 // pred_region
      %449 = dma.done [#allocation3], 256
    $region29: #{tpu_custom_call.1} parent=1 // pred_fallthru
      _
    %450 = vsyncpa [#allocation3], 1

</llo_original>
